<compile_context>
chip_gen: v5e
topology: v5e:2x2
jax: 0.10.0
libtpu: 0.0.40
codegen_flags: <defaults>
</compile_context>

<pallas_src>
import math

import jax
import jax.numpy as jnp
from jax.experimental import pallas as pl
from jax.experimental.pallas import tpu as pltpu


def _gelu_tanh(x):
    # GELU with tanh approximation, matching torch.nn.GELU(approximate='tanh').
    c = math.sqrt(2.0 / math.pi)
    return 0.5 * x * (1.0 + jnp.tanh(c * (x + 0.044715 * x * x * x)))


# ---------------------------------------------------------------------------
# Kernels
# ---------------------------------------------------------------------------

def mlp_kernel_resident(x_ref, w_fc_ref, b_fc_ref, w_proj_ref, b_proj_ref, o_ref):
    """Full weights VMEM-resident: one grid step == one row tile, no accumulator."""
    # (tm, C) @ (C, H) -> (tm, H), f32 accumulation on the MXU.
    h = jnp.dot(x_ref[...], w_fc_ref[...], preferred_element_type=jnp.float32)
    # Bias + tanh-GELU in f32 (tanh rides the EUP slot).
    h = _gelu_tanh(h + b_fc_ref[...])
    # Back to the compute dtype for the second MXU pass.
    h = h.astype(w_proj_ref.dtype)
    out = jnp.dot(h, w_proj_ref[...], preferred_element_type=jnp.float32)
    o_ref[...] = (out + b_proj_ref[...]).astype(o_ref.dtype)


def mlp_kernel_stream(x_ref, w_fc_ref, b_fc_ref, w_proj_ref, b_proj_ref, o_ref,
                      acc_ref):
    """H-slab streaming fallback with an f32 accumulator across the H axis."""
    j = pl.program_id(1)

    @pl.when(j == 0)
    def _init():
        acc_ref[...] = jnp.zeros_like(acc_ref)

    h = jnp.dot(x_ref[...], w_fc_ref[...], preferred_element_type=jnp.float32)
    h = _gelu_tanh(h + b_fc_ref[...])
    h = h.astype(w_proj_ref.dtype)
    acc_ref[...] += jnp.dot(h, w_proj_ref[...], preferred_element_type=jnp.float32)

    @pl.when(j == pl.num_programs(1) - 1)
    def _finalize():
        o_ref[...] = (acc_ref[...] + b_proj_ref[...]).astype(o_ref.dtype)


# ---------------------------------------------------------------------------
# Tiling / budget helpers
# ---------------------------------------------------------------------------

def _round_up(x, m):
    return (x + m - 1) // m * m


def _pick_row_tile(M, tm_req):
    """Row tile: <= tm_req, multiple of 16, and forces >= 2 tiles when M is big
    enough so the 'parallel' M axis can feed both TensorCores on v7x."""
    M16 = _round_up(M, 16)
    tm = min(tm_req, M16)
    if M16 >= 512:
        tm = min(tm, _round_up((M16 + 1) // 2, 16))
    return max(16, _round_up(tm, 16))


def _pick_h_tile(H, target):
    """Largest slab dividing H, preferring multiples of 256 (v6e/v7x MXU is
    2x256x256), then 128; falls back to full H."""
    for step in (256, 128):
        start = (min(target, H) // step) * step
        for t in range(start, 0, -step):
            if H % t == 0:
                return t
    return H


def _vmem_capacity_bytes():
    try:
        return int(pltpu.get_tpu_info().vmem_capacity_bytes)
    except Exception:
        return 128 * 1024 * 1024  # v5e/v6e physical VMEM


def _vmem_budget_bytes():
    cap = _vmem_capacity_bytes()
    # Headroom for compiler-managed temporaries: ~8 MiB on v7x (64 MiB
    # physical -> ~56 MiB usable), ~16 MiB on v5e/v6e (128 MiB -> ~112 MiB).
    return cap - max(8 * 1024 * 1024, cap // 8)


def _resident_vmem_bytes(tm, C, H, bpe, out_bpe, w_bufs):
    return (w_bufs * 2 * C * H * bpe           # W_fc + W_proj (resident)
            + 2 * tm * C * bpe                 # x tile, double-buffered
            + 2 * tm * C * out_bpe             # output tile, double-buffered
            + 2 * (H + C) * 4                  # biases (f32)
            + 2 * tm * H * 4                   # f32 h pre-/post-GELU temps
            + tm * H * bpe)                    # bf16 cast of h


def _streaming_vmem_bytes(tm, C, th, bpe, out_bpe):
    return (2 * (tm * C * bpe                  # x tile
                 + 2 * C * th * bpe            # W_fc + W_proj slabs
                 + (th + C) * 4                # bias slabs
                 + tm * C * out_bpe)           # output tile
            + tm * C * 4                       # f32 accumulator scratch
            + 2 * tm * th * 4 + tm * th * bpe)  # f32 h temps + bf16 cast


# ---------------------------------------------------------------------------
# Forward wrapper
# ---------------------------------------------------------------------------

def mlp_forward(x, w_fc, b_fc, w_proj, b_proj, *, tm=512, th=512,
                compute_dtype=jnp.bfloat16, out_dtype=None,
                force_streaming=False):
    """x: (B, T, C) -> (B, T, C). Fused c_fc + GELU(tanh) + c_proj Pallas kernel.

    Weights are stored transposed relative to nn.Linear: w_fc is (C, 4C),
    w_proj is (4C, C), so the kernel computes x @ W + b directly.  For best
    performance keep the weights in `compute_dtype` (bf16) outside this
    function so the .astype calls below are no-ops.
    """
    B, T, C = x.shape
    H = w_fc.shape[1]  # 4 * C
    M = B * T
    if out_dtype is None:
        out_dtype = x.dtype   # TODO(synk): pass bf16 here if the consumer tolerates it.

    bpe = jnp.dtype(compute_dtype).itemsize
    out_bpe = jnp.dtype(out_dtype).itemsize
    budget = _vmem_budget_bytes()

    # ---- pick execution path & tiles --------------------------------------
    tm_eff = _pick_row_tile(M, tm)
    resident = False
    single_buf_weights = False
    if not force_streaming:
        if _resident_vmem_bytes(tm_eff, C, H, bpe, out_bpe, w_bufs=2) <= budget:
            resident = True
        elif _resident_vmem_bytes(tm_eff, C, H, bpe, out_bpe, w_bufs=1) <= budget:
            resident, single_buf_weights = True, True

    if resident:
        th_eff = H
        est = _resident_vmem_bytes(tm_eff, C, H, bpe, out_bpe,
                                   1 if single_buf_weights else 2)
    else:
        # Streaming fallback: a bigger row tile halves weight re-stream traffic.
        tm_big = _pick_row_tile(M, max(tm, 1024))
        th_eff = _pick_h_tile(H, th)
        if _streaming_vmem_bytes(tm_big, C, th_eff, bpe, out_bpe) <= budget:
            tm_eff = tm_big
        est = _streaming_vmem_bytes(tm_eff, C, th_eff, bpe, out_bpe)

    M_pad = _round_up(M, tm_eff)
    n_row_tiles = M_pad // tm_eff

    # ---- prepare operands (cast BEFORE pad; weight casts are no-ops if the
    # caller already stores weights in compute_dtype) ------------------------
    x2d = x.reshape(M, C).astype(compute_dtype)
    if M_pad != M:
        x2d = jnp.pad(x2d, ((0, M_pad - M), (0, 0)))
    w_fc_c = w_fc.astype(compute_dtype)
    w_proj_c = w_proj.astype(compute_dtype)
    b_fc2d = b_fc.reshape(1, H).astype(jnp.float32)
    b_proj2d = b_proj.reshape(1, C).astype(jnp.float32)

    vmem_limit = int(min(budget, max(32 * 1024 * 1024, est + est // 4)))

    weight_bytes = 2 * C * H * bpe
    cost = pl.CostEstimate(
        flops=4 * M_pad * C * H,                   # two matmuls
        transcendentals=M_pad * H,                 # tanh in GELU
        bytes_accessed=(M_pad * C * bpe
                        + (weight_bytes if resident else n_row_tiles * weight_bytes)
                        + (H + C) * 4 * (1 if resident else n_row_tiles)
                        + M_pad * C * out_bpe),
    )

    if resident:
        w_mode = dict(pipeline_mode=pl.Buffered(1)) if single_buf_weights else {}
        grid_spec = pltpu.PrefetchScalarGridSpec(
            num_scalar_prefetch=0,
            grid=(n_row_tiles,),
            in_specs=[
                pl.BlockSpec((tm_eff, C), lambda i: (i, 0)),        # x row tile
                pl.BlockSpec((C, H), lambda i: (0, 0), **w_mode),   # W_fc (resident)
                pl.BlockSpec((1, H), lambda i: (0, 0)),             # b_fc
                pl.BlockSpec((H, C), lambda i: (0, 0), **w_mode),   # W_proj (resident)
                pl.BlockSpec((1, C), lambda i: (0, 0)),             # b_proj
            ],
            out_specs=pl.BlockSpec((tm_eff, C), lambda i: (i, 0)),
        )
        kernel = mlp_kernel_resident
        semantics = ("parallel",)
    else:
        grid_spec = pltpu.PrefetchScalarGridSpec(
            num_scalar_prefetch=0,
            grid=(n_row_tiles, H // th_eff),
            in_specs=[
                pl.BlockSpec((tm_eff, C), lambda i, j: (i, 0)),     # x row tile
                pl.BlockSpec((C, th_eff), lambda i, j: (0, j)),     # W_fc slab
                pl.BlockSpec((1, th_eff), lambda i, j: (0, j)),     # b_fc slab
                pl.BlockSpec((th_eff, C), lambda i, j: (j, 0)),     # W_proj slab
                pl.BlockSpec((1, C), lambda i, j: (0, 0)),          # b_proj
            ],
            out_specs=pl.BlockSpec((tm_eff, C), lambda i, j: (i, 0)),
            scratch_shapes=[pltpu.VMEM((tm_eff, C), jnp.float32)],
        )
        kernel = mlp_kernel_stream
        semantics = ("parallel", "arbitrary")

    out2d = pl.pallas_call(
        kernel,
        out_shape=jax.ShapeDtypeStruct((M_pad, C), out_dtype),
        grid_spec=grid_spec,
        compiler_params=pltpu.CompilerParams(
            dimension_semantics=semantics,
            vmem_limit_bytes=vmem_limit,
        ),
        cost_estimate=cost,
    )(x2d, w_fc_c, b_fc2d, w_proj_c, b_proj2d)

    if M_pad != M:
        out2d = out2d[:M]
    return out2d.reshape(B, T, C)


def mlp_reference(x, w_fc, b_fc, w_proj, b_proj):
    h = x @ w_fc + b_fc
    h = _gelu_tanh(h)
    return h @ w_proj + b_proj


if __name__ == "__main__":
    key = jax.random.PRNGKey(0)
    (kx, k1, k2, k3, k4, kx2, k5, k6, k7, k8, kx3) = jax.random.split(key, 11)

    # ---- Case 1: resident path, B*T divisible by the row tile -------------
    n_embd = 32
    H = 4 * n_embd
    # nn.Linear weights are (out, in); we store transposed (in, out) for x @ W.
    w_fc = jax.random.normal(k1, (n_embd, H), dtype=jnp.float32) * 0.02
    b_fc = jax.random.normal(k2, (H,), dtype=jnp.float32) * 0.02
    w_proj = jax.random.normal(k3, (H, n_embd), dtype=jnp.float32) * 0.02
    b_proj = jax.random.normal(k4, (n_embd,), dtype=jnp.float32) * 0.02

    # Hoist the bf16 weight casts out of the hot path (done once here).
    w_fc_b = w_fc.astype(jnp.bfloat16)
    w_proj_b = w_proj.astype(jnp.bfloat16)

    B, T = 2, 8
    x = jax.random.normal(kx, (B, T, n_embd), dtype=jnp.float32)
    out = jax.block_until_ready(mlp_forward(x, w_fc_b, b_fc, w_proj_b, b_proj))
    ref = mlp_reference(x, w_fc, b_fc, w_proj, b_proj)
    assert out.shape == (B, T, n_embd)
    assert jnp.allclose(out, ref, atol=2e-2, rtol=2e-2), "mismatch (resident)"

    # ---- Case 2: padding path (B*T not a multiple of 16) ------------------
    B2, T2 = 3, 5
    x2 = jax.random.normal(kx2, (B2, T2, n_embd), dtype=jnp.float32)
    out2 = jax.block_until_ready(mlp_forward(x2, w_fc_b, b_fc, w_proj_b, b_proj))
    ref2 = mlp_reference(x2, w_fc, b_fc, w_proj, b_proj)
    assert out2.shape == (B2, T2, n_embd)
    assert jnp.allclose(out2, ref2, atol=2e-2, rtol=2e-2), "mismatch (padded)"

    # ---- Case 3: H-slab streaming fallback (forced), 2 H slabs ------------
    n_embd3 = 64
    H3 = 4 * n_embd3
    w_fc3 = jax.random.normal(k5, (n_embd3, H3), dtype=jnp.float32) * 0.02
    b_fc3 = jax.random.normal(k6, (H3,), dtype=jnp.float32) * 0.02
    w_proj3 = jax.random.normal(k7, (H3, n_embd3), dtype=jnp.float32) * 0.02
    b_proj3 = jax.random.normal(k8, (n_embd3,), dtype=jnp.float32) * 0.02
    x3 = jax.random.normal(kx3, (2, 8, n_embd3), dtype=jnp.float32)
    out3 = jax.block_until_ready(
        mlp_forward(x3, w_fc3, b_fc3, w_proj3, b_proj3,
                    th=128, force_streaming=True))
    ref3 = mlp_reference(x3, w_fc3, b_fc3, w_proj3, b_proj3)
    assert out3.shape == (2, 8, n_embd3)
    assert jnp.allclose(out3, ref3, atol=2e-2, rtol=2e-2), "mismatch (streaming)"

    print("KERNEL_OK")
</pallas_src>

<mosaic_0001>
module attributes {stable_mosaic.version = 11 : i64} {
  func.func @mlp_kernel_resident(%arg0: i32, %arg1: memref<16x32xbf16, #tpu.memory_space<vmem>>, %arg2: memref<32x128xbf16, #tpu.memory_space<vmem>>, %arg3: memref<1x128xf32, #tpu.memory_space<vmem>>, %arg4: memref<128x32xbf16, #tpu.memory_space<vmem>>, %arg5: memref<1x32xf32, #tpu.memory_space<vmem>>, %arg6: memref<16x32xf32, #tpu.memory_space<vmem>>) attributes {dimension_semantics = [#tpu.dimension_semantics<parallel>], iteration_bounds = array<i64: 1>, scalar_prefetch = 0 : i64, scratch_operands = 0 : i64, tpu.core_type = #tpu.core_type<tc>, window_params = [{transform_indices = @transform_0, window_bounds = array<i64: 16, 32>}, {pipeline_mode = #tpu.pipeline_mode<synchronous>, transform_indices = @transform_1, window_bounds = array<i64: 32, 128>}, {pipeline_mode = #tpu.pipeline_mode<synchronous>, transform_indices = @transform_2, window_bounds = array<i64: 1, 128>}, {pipeline_mode = #tpu.pipeline_mode<synchronous>, transform_indices = @transform_3, window_bounds = array<i64: 128, 32>}, {pipeline_mode = #tpu.pipeline_mode<synchronous>, transform_indices = @transform_4, window_bounds = array<i64: 1, 32>}, {transform_indices = @transform_5, window_bounds = array<i64: 16, 32>}]} {
    %c0 = arith.constant 0 : index
    %c0_0 = arith.constant 0 : index
    %0 = vector.load %arg1[%c0, %c0_0] : memref<16x32xbf16, #tpu.memory_space<vmem>>, vector<16x32xbf16>
    %c0_1 = arith.constant 0 : index
    %c0_2 = arith.constant 0 : index
    %1 = vector.load %arg2[%c0_1, %c0_2] : memref<32x128xbf16, #tpu.memory_space<vmem>>, vector<32x128xbf16>
    %cst = arith.constant dense<0.000000e+00> : vector<16x128xf32>
    %2 = tpu.matmul %0, %1, %cst {dimension_numbers = #tpu.dot_dimension_numbers<[1], [0], [0], [1], [0, 0, 1, 1], [], []>} : vector<16x32xbf16>, vector<32x128xbf16>, vector<16x128xf32> -> vector<16x128xf32>
    %c0_3 = arith.constant 0 : index
    %c0_4 = arith.constant 0 : index
    %3 = vector.load %arg3[%c0_3, %c0_4] : memref<1x128xf32, #tpu.memory_space<vmem>>, vector<1x128xf32>
    %4 = vector.broadcast %3 : vector<1x128xf32> to vector<16x128xf32>
    %5 = arith.addf %2, %4 : vector<16x128xf32>
    %cst_5 = arith.constant 5.000000e-01 : f32
    %6 = vector.broadcast %cst_5 : f32 to vector<16x128xf32>
    %7 = arith.mulf %6, %5 : vector<16x128xf32>
    %cst_6 = arith.constant 4.471500e-02 : f32
    %8 = vector.broadcast %cst_6 : f32 to vector<16x128xf32>
    %9 = arith.mulf %8, %5 : vector<16x128xf32>
    %10 = arith.mulf %9, %5 : vector<16x128xf32>
    %11 = arith.mulf %10, %5 : vector<16x128xf32>
    %12 = arith.addf %5, %11 : vector<16x128xf32>
    %cst_7 = arith.constant 0.797884583 : f32
    %13 = vector.broadcast %cst_7 : f32 to vector<16x128xf32>
    %14 = arith.mulf %13, %12 : vector<16x128xf32>
    %15 = math.tanh %14 : vector<16x128xf32>
    %cst_8 = arith.constant 1.000000e+00 : f32
    %16 = vector.broadcast %cst_8 : f32 to vector<16x128xf32>
    %17 = arith.addf %16, %15 : vector<16x128xf32>
    %18 = arith.mulf %7, %17 : vector<16x128xf32>
    %19 = arith.truncf %18 : vector<16x128xf32> to vector<16x128xbf16>
    %c0_9 = arith.constant 0 : index
    %c0_10 = arith.constant 0 : index
    %20 = vector.load %arg4[%c0_9, %c0_10] : memref<128x32xbf16, #tpu.memory_space<vmem>>, vector<128x32xbf16>
    %cst_11 = arith.constant dense<0.000000e+00> : vector<16x32xf32>
    %21 = tpu.matmul %19, %20, %cst_11 {dimension_numbers = #tpu.dot_dimension_numbers<[1], [0], [0], [1], [0, 0, 1, 1], [], []>} : vector<16x128xbf16>, vector<128x32xbf16>, vector<16x32xf32> -> vector<16x32xf32>
    %c0_12 = arith.constant 0 : index
    %c0_13 = arith.constant 0 : index
    %22 = vector.load %arg5[%c0_12, %c0_13] : memref<1x32xf32, #tpu.memory_space<vmem>>, vector<1x32xf32>
    %23 = vector.broadcast %22 : vector<1x32xf32> to vector<16x32xf32>
    %24 = arith.addf %21, %23 : vector<16x32xf32>
    %c0_14 = arith.constant 0 : index
    %c0_15 = arith.constant 0 : index
    %25 = vector.load %arg6[%c0_14, %c0_15] : memref<16x32xf32, #tpu.memory_space<vmem>>, vector<16x32xf32>
    tpu.vector_store %arg6[%c0_14, %c0_15], %24 {strides = array<i32>} : memref<16x32xf32, #tpu.memory_space<vmem>>, vector<16x32xf32>,
    return
  }
  func.func @transform_0(%arg0: i32) -> (i32, i32) {
    %c0_i32 = arith.constant 0 : i32
    %c0_i32_0 = arith.constant 0 : i32
    return %arg0, %c0_i32 : i32, i32
  }
  func.func @transform_1(%arg0: i32) -> (i32, i32) {
    %c0_i32 = arith.constant 0 : i32
    %c0_i32_0 = arith.constant 0 : i32
    %c0_i32_1 = arith.constant 0 : i32
    return %c0_i32, %c0_i32_0 : i32, i32
  }
  func.func @transform_2(%arg0: i32) -> (i32, i32) {
    %c0_i32 = arith.constant 0 : i32
    %c0_i32_0 = arith.constant 0 : i32
    %c0_i32_1 = arith.constant 0 : i32
    return %c0_i32, %c0_i32_0 : i32, i32
  }
  func.func @transform_3(%arg0: i32) -> (i32, i32) {
    %c0_i32 = arith.constant 0 : i32
    %c0_i32_0 = arith.constant 0 : i32
    %c0_i32_1 = arith.constant 0 : i32
    return %c0_i32, %c0_i32_0 : i32, i32
  }
  func.func @transform_4(%arg0: i32) -> (i32, i32) {
    %c0_i32 = arith.constant 0 : i32
    %c0_i32_0 = arith.constant 0 : i32
    %c0_i32_1 = arith.constant 0 : i32
    return %c0_i32, %c0_i32_0 : i32, i32
  }
  func.func @transform_5(%arg0: i32) -> (i32, i32) {
    %c0_i32 = arith.constant 0 : i32
    %c0_i32_0 = arith.constant 0 : i32
    return %arg0, %c0_i32 : i32, i32
  }
}

</mosaic_0001>

<llo_original>
// kernel: tpu_custom_call.1
$region0: #{tpu_custom_call.1}
  #allocation0 [shape = 'u32[]', space=smem, size = 0x4, offset = 0x4, fixed_abs, tag = 'smem constant byte address 0x4 - core index']
  #allocation1 [shape = 'u32[72,128]{1,0:T(1,128)}', space=vmem, size = 0x9000, scoped, tag = 'internal scratch']
  %s0 = inlined_call_operand.vmem [shape: bf16[16,32], index: 0, kind: input, shape index: {}]
  %s1 = inlined_call_operand.vmem [shape: bf16[32,128], index: 1, kind: input, shape index: {}]
  %s2 = inlined_call_operand.vmem [shape: f32[1,128], index: 2, kind: input, shape index: {}]
  %s3 = inlined_call_operand.vmem [shape: bf16[128,32], index: 3, kind: input, shape index: {}]
  %s4 = inlined_call_operand.vmem [shape: f32[1,32], index: 4, kind: input, shape index: {}]
  %s5 = inlined_call_operand.hbm [shape: f32[16,32], index: 5, kind: output, shape index: {}]
  %s6 = sld [smem:[#allocation0]]
  $region30: #{tpu_custom_call.1} parent=0
    _
  %s8 = ssub.s32 1, %s6
  %s9 = scalar_select 0, %s8, %s6
  $region1: #{tpu_custom_call.1} parent=0
    #allocation2 [shape = 'u8[8192]{0}', space=vmem, size = 0x2000, scoped, tag = 'output window, operand 0, single buffered']
    #allocation3 [shape = 's32[1]{0}', space=sflag, size = 0x4, scoped, tag = 'scoped memory for tpu_custom_call.1']
    %10 = vsyncpa [#allocation3], 0
    // Predicated region
    $region2: #{tpu_custom_call.1} parent=1 // pred_check
      _
    $region3: #{tpu_custom_call.1} parent=1 // pred_check_branch
      %12 = sbr.rel (0) target = $region5
    $region4: #{tpu_custom_call.1} parent=1 // pred_region
      _
    $region5: #{tpu_custom_call.1} parent=1 // pred_fallthru
      _
    // Predicated region
    $region6: #{tpu_custom_call.1} parent=1 // pred_check
      _
    $region7: #{tpu_custom_call.1} parent=1 // pred_check_branch
      %14 = sbr.rel (0) target = $region9
    $region8: #{tpu_custom_call.1} parent=1 // pred_region
      _
    $region9: #{tpu_custom_call.1} parent=1 // pred_fallthru
      _
    // Predicated region
    $region10: #{tpu_custom_call.1} parent=1 // pred_check
      _
    $region11: #{tpu_custom_call.1} parent=1 // pred_check_branch
      %16 = sbr.rel (0) target = $region13
    $region12: #{tpu_custom_call.1} parent=1 // pred_region
      _
    $region13: #{tpu_custom_call.1} parent=1 // pred_fallthru
      _
    // Predicated region
    $region14: #{tpu_custom_call.1} parent=1 // pred_check
      _
    $region15: #{tpu_custom_call.1} parent=1 // pred_check_branch
      %18 = sbr.rel (0) target = $region17
    $region16: #{tpu_custom_call.1} parent=1 // pred_region
      _
    $region17: #{tpu_custom_call.1} parent=1 // pred_fallthru
      _
    // Predicated region
    $region18: #{tpu_custom_call.1} parent=1 // pred_check
      _
    $region19: #{tpu_custom_call.1} parent=1 // pred_check_branch
      %20 = sbr.rel (0) target = $region21
    $region20: #{tpu_custom_call.1} parent=1 // pred_region
      _
    $region21: #{tpu_custom_call.1} parent=1 // pred_fallthru
      _
    %v22 = vld [vmem:[%s0] sm:$0xf]
    %v23 = vld [vmem:[%s0 + $0x4] sm:$0xf]
    %v24 = vld [vmem:[%s1] sm:$0xf]
    %v25 = vld [vmem:[%s1 + $0x4] sm:$0xf]
    %v26 = vld [vmem:[%s1 + $0x8] sm:$0xf]
    %v27 = vld [vmem:[%s1 + $0xc] sm:$0xf]
    %v28 = vld [vmem:[%s2] sm:$0x1]
    %v30 = vperm.slane %v28, 0
    %v34 = vunpack.c.l.b16 %v22
    %v35 = vunpack.c.l.b16 %v23
    %v36 = vpack.c.b16 %v35, %v34
    %v41 = vunpack.c.l.b16 %v24
    %v42 = vunpack.c.l.b16 %v25
    %v43 = vunpack.c.l.b16 %v26
    %v44 = vunpack.c.l.b16 %v27
    %v45 = vpack.c.b16 %v42, %v41
    %v46 = vpack.c.b16 %v44, %v43
    %vm49 = vcmask 261120
    %v51 = vsel %vm49, %v36, 0
    %53 = vmatpush.bf16.msra.mxu0 0
    %54 = vmatpush.bf16.msra.mxu0 0
    %55 = vmatpush.bf16.msra.mxu0 0
    %56 = vmatpush.bf16.msra.mxu0 0
    %57 = vmatpush.bf16.msra.mxu0 0
    %58 = vmatpush.bf16.msra.mxu0 0
    %59 = vmatpush.bf16.msra.mxu0 %v46
    %60 = vmatpush.bf16.msra.mxu0 %v45
    %61 = vmatmul.bf16.gmra.mxu0 %v51
    %v62 = vpop.f32.mrf.mxu0
    %v63 = vadd.f32 %v30, %v62
    %v64 = vpop.f32.mrf.mxu0
    %v65 = vadd.f32 %v30, %v64
    %66 = vdwg.mxu0
    %v67 = vmul.f32 %v63, 0.5
    %v68 = vmul.f32 %v65, 0.5
    %v69 = vmul.f32 %v63, 0.044715
    %v70 = vmul.f32 %v65, 0.044715
    %v71 = vmul.f32 %v69, %v63
    %v72 = vmul.f32 %v70, %v65
    %v73 = vmul.f32 %v71, %v63
    %v74 = vmul.f32 %v72, %v65
    %v75 = vadd.f32 %v63, %v73
    %v76 = vadd.f32 %v65, %v74
    %v77 = vmul.f32 %v75, 0.7978846
    %v78 = vmul.f32 %v76, 0.7978846
    %v79 = vtanh.pop %v77
    %v80 = vtanh.pop %v78
    %v81 = vadd.f32 %v79, 1.0
    %v82 = vadd.f32 %v80, 1.0
    %v83 = vmul.f32 %v67, %v81
    %v84 = vmul.f32 %v68, %v82
    %v85 = vpack.c.bf16 %v84, %v83
    %v86 = vld [vmem:[%s3] sm:$0xf]
    %v87 = vld [vmem:[%s3 + $0x4] sm:$0xf]
    %v88 = vld [vmem:[%s3 + $0x8] sm:$0xf]
    %v89 = vld [vmem:[%s3 + $0xc] sm:$0xf]
    %v90 = vld [vmem:[%s3 + $0x10] sm:$0xf]
    %v91 = vld [vmem:[%s3 + $0x14] sm:$0xf]
    %v92 = vld [vmem:[%s3 + $0x18] sm:$0xf]
    %v93 = vld [vmem:[%s3 + $0x1c] sm:$0xf]
    %v94 = vld [vmem:[%s3 + $0x20] sm:$0xf]
    %v95 = vld [vmem:[%s3 + $0x24] sm:$0xf]
    %v96 = vld [vmem:[%s3 + $0x28] sm:$0xf]
    %v97 = vld [vmem:[%s3 + $0x2c] sm:$0xf]
    %v98 = vld [vmem:[%s3 + $0x30] sm:$0xf]
    %v99 = vld [vmem:[%s3 + $0x34] sm:$0xf]
    %v100 = vld [vmem:[%s3 + $0x38] sm:$0xf]
    %v101 = vld [vmem:[%s3 + $0x3c] sm:$0xf]
    %v102 = vld [vmem:[%s4] sm:$0x1]
    %v104 = vperm.slane %v102, 0
    %v122 = vunpack.c.l.b16 %v86
    %v123 = vunpack.c.l.b16 %v87
    %v124 = vunpack.c.l.b16 %v88
    %v125 = vunpack.c.l.b16 %v89
    %v126 = vunpack.c.l.b16 %v90
    %v127 = vunpack.c.l.b16 %v91
    %v128 = vunpack.c.l.b16 %v92
    %v129 = vunpack.c.l.b16 %v93
    %v130 = vunpack.c.l.b16 %v94
    %v131 = vunpack.c.l.b16 %v95
    %v132 = vunpack.c.l.b16 %v96
    %v133 = vunpack.c.l.b16 %v97
    %v134 = vunpack.c.l.b16 %v98
    %v135 = vunpack.c.l.b16 %v99
    %v136 = vunpack.c.l.b16 %v100
    %v137 = vunpack.c.l.b16 %v101
    %v138 = vpack.c.b16 %v123, %v122
    %v139 = vpack.c.b16 %v125, %v124
    %v140 = vpack.c.b16 %v127, %v126
    %v141 = vpack.c.b16 %v129, %v128
    %v142 = vpack.c.b16 %v131, %v130
    %v143 = vpack.c.b16 %v133, %v132
    %v144 = vpack.c.b16 %v135, %v134
    %v145 = vpack.c.b16 %v137, %v136
    %154 = vmatpush.bf16.msra.mxu0 %v145
    %155 = vmatpush.bf16.msra.mxu0 %v144
    %156 = vmatpush.bf16.msra.mxu0 %v143
    %157 = vmatpush.bf16.msra.mxu0 %v142
    %158 = vmatpush.bf16.msra.mxu0 %v141
    %159 = vmatpush.bf16.msra.mxu0 %v140
    %160 = vmatpush.bf16.msra.mxu0 %v139
    %161 = vmatpush.bf16.msra.mxu0 %v138
    %162 = vmatmul.bf16.gmra.mxu0 %v85
    %v163 = vpop.f32.mrf.mxu0
    %v164 = vadd.f32 %v104, %v163
    %v165 = vpop.f32.mrf.mxu0
    %v166 = vadd.f32 %v104, %v165
    %167 = vdwg.mxu0
    %168 = vst.msk [vmem:[#allocation2] sm:$0xff] %vm49, %v164
    %169 = vst.msk [vmem:[#allocation2 + $0x8] sm:$0xff] %vm49, %v166
    // Predicated region
    $region22: #{tpu_custom_call.1} parent=1 // pred_check
      _
    $region23: #{tpu_custom_call.1} parent=1 // pred_check_branch
      %171 = sbr.rel (0) target = $region25
    $region24: #{tpu_custom_call.1} parent=1 // pred_region
      %173 = vsyncadd [#allocation3], 0
      %s174 = sshll.u32 [#allocation2], 4
      %s175 = int_to_ptr.vmem [resolvable:$true] %s174
      %s176 = sshll.u32 %s5, 4
      %s177 = int_to_ptr.hbm [resolvable:$true] %s176
      %182 = dma.vmem_to_hbm [thread:$0]  %s175, 256, %s177, [#allocation3], 128, 128, 8
    $region25: #{tpu_custom_call.1} parent=1 // pred_fallthru
      _
    // Predicated region
    $region26: #{tpu_custom_call.1} parent=1 // pred_check
      _
    $region27: #{tpu_custom_call.1} parent=1 // pred_check_branch
      %184 = sbr.rel (0) target = $region29
    $region28: #{tpu_custom_call.1} parent=1 // pred_region
      %186 = dma.done [#allocation3], 256
    $region29: #{tpu_custom_call.1} parent=1 // pred_fallthru
      _
    %187 = vsyncpa [#allocation3], 1

</llo_original>
